<compile_context>
chip_gen: v6e
topology: v6e:2x2x1
jax: 0.10.0
libtpu: 0.0.40
codegen_flags: <defaults>
</compile_context>

<pallas_src>
import functools
import itertools

import jax
import jax.numpy as jnp
from jax import lax
from jax.experimental import pallas as pl
from jax.experimental.pallas import tpu as pltpu

BN_EPS = 1e-5


def _round_up(x, m):
    return (x + m - 1) // m * m


def _matmul_stats_kernel(p_ref, w_ref, y_ref, stats_ref):
    # bf16 x bf16 -> f32 on the MXU.
    y = jnp.dot(p_ref[...], w_ref[...], preferred_element_type=jnp.float32)
    y_ref[...] = y
    # Per-tile partial BatchNorm statistics (channel sum / sum of squares).
    s1 = jnp.sum(y, axis=0, keepdims=True)       # (1, TN)
    s2 = jnp.sum(y * y, axis=0, keepdims=True)   # (1, TN)
    stats_ref[0] = jnp.concatenate([s1, s2], axis=0)   # (2, TN)


def _bn_relu_kernel(y_ref, scale_ref, shift_ref, o_ref):
    # Fused normalize + affine + ReLU:  max(y*scale + shift, 0).
    o_ref[...] = jnp.maximum(y_ref[...] * scale_ref[...] + shift_ref[...], 0.0)


def _im2col_nchw(x, kh, kw, stride, padding, dilation):
    """x: (N, Cin, H, W) -> patches (N*OH*OW, KH*KW*Cin), plus (OH, OW)."""
    n, cin, h, w = x.shape
    x_nhwc = jnp.transpose(x, (0, 2, 3, 1))  # N, H, W, Cin
    x_pad = jnp.pad(x_nhwc,
                    ((0, 0), (padding, padding), (padding, padding), (0, 0)))
    oh = (h + 2 * padding - dilation * (kh - 1) - 1) // stride + 1
    ow = (w + 2 * padding - dilation * (kw - 1) - 1) // stride + 1
    cols = []
    for ki, kj in itertools.product(range(kh), range(kw)):
        r0 = ki * dilation
        c0 = kj * dilation
        sl = x_pad[:, r0:r0 + (oh - 1) * stride + 1:stride,
                   c0:c0 + (ow - 1) * stride + 1:stride, :]  # (N, OH, OW, Cin)
        cols.append(sl)
    # (N, OH, OW, KH*KW, Cin) -> (N*OH*OW, KH*KW*Cin); inner order (kh, kw, cin)
    patches = jnp.stack(cols, axis=3)
    patches = patches.reshape(n * oh * ow, kh * kw * cin)
    return patches, oh, ow


@functools.partial(jax.jit, static_argnames=("stride", "padding", "dilation"))
def conv_bn_relu(x, weight, bias, gamma, beta, *, stride=1, padding=0,
                 dilation=1):
    """x: (N, Cin, H, W) NCHW, weight: (Cout, Cin, KH, KW) OIHW.

    Returns (N, Cout, OH, OW) NCHW, matching PyTorch ConvBnRelu forward in
    training mode (batch statistics for BN, biased variance, eps=1e-5).
    """
    del bias  # exactly cancelled by the training-mode BN mean subtraction
    n, cin, _, _ = x.shape
    cout, cin_w, kh, kw = weight.shape
    assert cin == cin_w, "groups != 1 not supported"  # TODO(synk): grouped conv

    # TODO(synk): im2col in the wrapper writes KH*KW x the input bytes through
    # HBM; an in-kernel (kh,kw) accumulation grid axis would cut that ~9x.
    patches, oh, ow = _im2col_nchw(x, kh, kw, stride, padding, dilation)
    rows, kdim = patches.shape

    # Padding / tiling so the MXU sees full-width contractions and the output
    # is lane-dense (last dim multiple of 128).
    kp = _round_up(kdim, 128)
    cp = _round_up(cout, 128)
    tm = 512 if rows >= 512 else _round_up(rows, 8)
    rows_p = _round_up(rows, tm)
    tn = 256 if cp % 256 == 0 else 128
    n_row_tiles = rows_p // tm
    n_col_tiles = cp // tn

    patches_p = jnp.pad(patches, ((0, rows_p - rows), (0, kp - kdim)))
    patches_p = patches_p.astype(jnp.bfloat16)
    # (Cout, Cin, KH, KW) -> (KH, KW, Cin, Cout) -> (KH*KW*Cin, Cout), padded.
    w_mat = jnp.transpose(weight, (2, 3, 1, 0)).reshape(kdim, cout)
    w_p = jnp.pad(w_mat, ((0, kp - kdim), (0, cp - cout))).astype(jnp.bfloat16)

    cparams = pltpu.CompilerParams(
        dimension_semantics=("parallel", "parallel"),
        vmem_limit_bytes=32 * 1024 * 1024)

    # Phase 1: conv-as-matmul + per-tile partial BN statistics.
    y_p, partial_stats = pl.pallas_call(
        _matmul_stats_kernel,
        out_shape=(
            jax.ShapeDtypeStruct((rows_p, cp), jnp.float32),
            jax.ShapeDtypeStruct((n_row_tiles, 2, cp), jnp.float32),
        ),
        grid=(n_row_tiles, n_col_tiles),
        in_specs=[
            pl.BlockSpec((tm, kp), lambda i, j: (i, 0)),
            pl.BlockSpec((kp, tn), lambda i, j: (0, j)),
        ],
        out_specs=(
            pl.BlockSpec((tm, tn), lambda i, j: (i, j)),
            pl.BlockSpec((1, 2, tn), lambda i, j: (i, 0, j)),
        ),
        compiler_params=cparams,
    )(patches_p, w_p)

    # Tiny cross-tile reduction; fold BN affine into one per-channel
    # scale/shift.  Padded rows / channels are zeros -> contribute nothing;
    # divide by the true row count.
    sums = jnp.sum(partial_stats, axis=0)                   # (2, Cp)
    mean = sums[0] / rows
    var = jnp.maximum(sums[1] / rows - mean * mean, 0.0)    # biased variance
    gamma_p = jnp.pad(gamma.astype(jnp.float32), (0, cp - cout))
    beta_p = jnp.pad(beta.astype(jnp.float32), (0, cp - cout))
    scale = gamma_p * lax.rsqrt(var + BN_EPS)
    shift = beta_p - mean * scale
    scale2d = scale.reshape(1, cp)
    shift2d = shift.reshape(1, cp)

    # Phase 2: normalize + ReLU (f32 epilogue).
    # TODO(synk): emit bf16 output (halves writeback) if the consumer allows.
    out_p = pl.pallas_call(
        _bn_relu_kernel,
        out_shape=jax.ShapeDtypeStruct((rows_p, cp), jnp.float32),
        grid=(n_row_tiles, n_col_tiles),
        in_specs=[
            pl.BlockSpec((tm, tn), lambda i, j: (i, j)),
            pl.BlockSpec((1, tn), lambda i, j: (0, j)),
            pl.BlockSpec((1, tn), lambda i, j: (0, j)),
        ],
        out_specs=pl.BlockSpec((tm, tn), lambda i, j: (i, j)),
        compiler_params=cparams,
    )(y_p, scale2d, shift2d)

    # Strip padding, (N*OH*OW, Cout) -> (N, OH, OW, Cout) -> NCHW.
    out = out_p[:rows, :cout].reshape(n, oh, ow, cout)
    return jnp.transpose(out, (0, 3, 1, 2))


def _reference(x, weight, bias, gamma, beta, stride, padding, dilation):
    # Conv with bf16-quantized operands + f32 accumulation (matches the
    # kernel's MXU precision), then f32 BN (training mode) + ReLU.
    y = lax.conv_general_dilated(
        x.astype(jnp.bfloat16), weight.astype(jnp.bfloat16),
        window_strides=(stride, stride),
        padding=((padding, padding), (padding, padding)),
        rhs_dilation=(dilation, dilation),
        dimension_numbers=("NCHW", "OIHW", "NCHW"),
        preferred_element_type=jnp.float32)
    y = y + bias.reshape(1, -1, 1, 1).astype(jnp.float32)
    mean = jnp.mean(y, axis=(0, 2, 3), keepdims=True)
    var = jnp.mean((y - mean) ** 2, axis=(0, 2, 3), keepdims=True)
    y = (y - mean) * lax.rsqrt(var + BN_EPS)
    y = y * gamma.reshape(1, -1, 1, 1) + beta.reshape(1, -1, 1, 1)
    return jnp.maximum(y, 0.0)


if __name__ == "__main__":
    # Small deterministic setup: ConvBnRelu(in=4, out=8, kernel=3, stride=1, pad=1)
    N, CIN, H, W = 2, 4, 16, 16
    COUT, KH, KW = 8, 3, 3
    STRIDE, PAD, DIL = 1, 1, 1

    key = jax.random.PRNGKey(0)
    kx, kw_, kb, kg, kbeta = jax.random.split(key, 5)

    x = jax.random.normal(kx, (N, CIN, H, W), dtype=jnp.float32)
    fan_in = CIN * KH * KW
    bound = 1.0 / (fan_in ** 0.5)
    weight = jax.random.uniform(kw_, (COUT, CIN, KH, KW), jnp.float32,
                                -bound, bound)
    bias = jax.random.uniform(kb, (COUT,), jnp.float32, -bound, bound)
    gamma = 1.0 + 0.1 * jax.random.normal(kg, (COUT,), jnp.float32)
    beta = 0.1 * jax.random.normal(kbeta, (COUT,), jnp.float32)

    out = conv_bn_relu(x, weight, bias, gamma, beta,
                       stride=STRIDE, padding=PAD, dilation=DIL)
    out = jax.block_until_ready(out)

    ref = _reference(x, weight, bias, gamma, beta, STRIDE, PAD, DIL)
    assert out.shape == (N, COUT, H, W), out.shape
    assert jnp.allclose(out, ref, atol=5e-3, rtol=5e-3), (
        float(jnp.max(jnp.abs(out - ref))))

    print("KERNEL_OK")
</pallas_src>

<mosaic_0001>
module attributes {stable_mosaic.version = 11 : i64} {
  func.func @_bn_relu_kernel(%arg0: i32, %arg1: i32, %arg2: memref<512x128xf32, #tpu.memory_space<vmem>>, %arg3: memref<1x128xf32, #tpu.memory_space<vmem>>, %arg4: memref<1x128xf32, #tpu.memory_space<vmem>>, %arg5: memref<512x128xf32, #tpu.memory_space<vmem>>) attributes {dimension_semantics = [#tpu.dimension_semantics<parallel>, #tpu.dimension_semantics<parallel>], iteration_bounds = array<i64: 1, 1>, scalar_prefetch = 0 : i64, scratch_operands = 0 : i64, tpu.core_type = #tpu.core_type<tc>, window_params = [{transform_indices = @transform_0, window_bounds = array<i64: 512, 128>}, {transform_indices = @transform_1, window_bounds = array<i64: 1, 128>}, {transform_indices = @transform_2, window_bounds = array<i64: 1, 128>}, {transform_indices = @transform_3, window_bounds = array<i64: 512, 128>}]} {
    %c0 = arith.constant 0 : index
    %c0_0 = arith.constant 0 : index
    %0 = vector.load %arg2[%c0, %c0_0] : memref<512x128xf32, #tpu.memory_space<vmem>>, vector<512x128xf32>
    %c0_1 = arith.constant 0 : index
    %c0_2 = arith.constant 0 : index
    %1 = vector.load %arg3[%c0_1, %c0_2] : memref<1x128xf32, #tpu.memory_space<vmem>>, vector<1x128xf32>
    %2 = vector.broadcast %1 : vector<1x128xf32> to vector<512x128xf32>
    %3 = arith.mulf %0, %2 : vector<512x128xf32>
    %c0_3 = arith.constant 0 : index
    %c0_4 = arith.constant 0 : index
    %4 = vector.load %arg4[%c0_3, %c0_4] : memref<1x128xf32, #tpu.memory_space<vmem>>, vector<1x128xf32>
    %5 = vector.broadcast %4 : vector<1x128xf32> to vector<512x128xf32>
    %6 = arith.addf %3, %5 : vector<512x128xf32>
    %cst = arith.constant 0.000000e+00 : f32
    %7 = vector.broadcast %cst : f32 to vector<512x128xf32>
    %8 = arith.maximumf %6, %7 : vector<512x128xf32>
    %c0_5 = arith.constant 0 : index
    %c0_6 = arith.constant 0 : index
    %9 = vector.load %arg5[%c0_5, %c0_6] : memref<512x128xf32, #tpu.memory_space<vmem>>, vector<512x128xf32>
    tpu.vector_store %arg5[%c0_5, %c0_6], %8 {strides = array<i32>} : memref<512x128xf32, #tpu.memory_space<vmem>>, vector<512x128xf32>,
    return
  }
  func.func @transform_0(%arg0: i32, %arg1: i32) -> (i32, i32) {
    %c0_i32 = arith.constant 0 : i32
    return %arg0, %arg1 : i32, i32
  }
  func.func @transform_1(%arg0: i32, %arg1: i32) -> (i32, i32) {
    %c0_i32 = arith.constant 0 : i32
    %c0_i32_0 = arith.constant 0 : i32
    return %c0_i32, %arg1 : i32, i32
  }
  func.func @transform_2(%arg0: i32, %arg1: i32) -> (i32, i32) {
    %c0_i32 = arith.constant 0 : i32
    %c0_i32_0 = arith.constant 0 : i32
    return %c0_i32, %arg1 : i32, i32
  }
  func.func @transform_3(%arg0: i32, %arg1: i32) -> (i32, i32) {
    %c0_i32 = arith.constant 0 : i32
    return %arg0, %arg1 : i32, i32
  }
}

module attributes {stable_mosaic.version = 11 : i64} {
  func.func @_matmul_stats_kernel(%arg0: i32, %arg1: i32, %arg2: memref<512x128xbf16, #tpu.memory_space<vmem>>, %arg3: memref<128x128xbf16, #tpu.memory_space<vmem>>, %arg4: memref<512x128xf32, #tpu.memory_space<vmem>>, %arg5: memref<1x2x128xf32, #tpu.memory_space<vmem>>) attributes {dimension_semantics = [#tpu.dimension_semantics<parallel>, #tpu.dimension_semantics<parallel>], iteration_bounds = array<i64: 1, 1>, scalar_prefetch = 0 : i64, scratch_operands = 0 : i64, tpu.core_type = #tpu.core_type<tc>, window_params = [{transform_indices = @transform_0, window_bounds = array<i64: 512, 128>}, {transform_indices = @transform_1, window_bounds = array<i64: 128, 128>}, {transform_indices = @transform_2, window_bounds = array<i64: 512, 128>}, {transform_indices = @transform_3, window_bounds = array<i64: 1, 2, 128>}]} {
    %c0 = arith.constant 0 : index
    %c0_0 = arith.constant 0 : index
    %0 = vector.load %arg2[%c0, %c0_0] : memref<512x128xbf16, #tpu.memory_space<vmem>>, vector<512x128xbf16>
    %c0_1 = arith.constant 0 : index
    %c0_2 = arith.constant 0 : index
    %1 = vector.load %arg3[%c0_1, %c0_2] : memref<128x128xbf16, #tpu.memory_space<vmem>>, vector<128x128xbf16>
    %cst = arith.constant dense<0.000000e+00> : vector<512x128xf32>
    %2 = tpu.matmul %0, %1, %cst {dimension_numbers = #tpu.dot_dimension_numbers<[1], [0], [0], [1], [0, 0, 1, 1], [], []>} : vector<512x128xbf16>, vector<128x128xbf16>, vector<512x128xf32> -> vector<512x128xf32>
    %c0_3 = arith.constant 0 : index
    %c0_4 = arith.constant 0 : index
    %3 = vector.load %arg4[%c0_3, %c0_4] : memref<512x128xf32, #tpu.memory_space<vmem>>, vector<512x128xf32>
    tpu.vector_store %arg4[%c0_3, %c0_4], %2 {strides = array<i32>} : memref<512x128xf32, #tpu.memory_space<vmem>>, vector<512x128xf32>,
    %cst_5 = arith.constant dense<0.000000e+00> : vector<128xf32>
    %4 = vector.multi_reduction <add>, %2, %cst_5 [0] : vector<512x128xf32> to vector<128xf32>
    %5 = vector.shape_cast %4 : vector<128xf32> to vector<1x128xf32>
    %6 = arith.mulf %2, %2 : vector<512x128xf32>
    %cst_6 = arith.constant dense<0.000000e+00> : vector<128xf32>
    %7 = vector.multi_reduction <add>, %6, %cst_6 [0] : vector<512x128xf32> to vector<128xf32>
    %8 = vector.shape_cast %7 : vector<128xf32> to vector<1x128xf32>
    %9 = tpu.concatenate %5, %8 in 0 : vector<1x128xf32>, vector<1x128xf32> -> vector<2x128xf32>
    %c0_7 = arith.constant 0 : index
    %c0_8 = arith.constant 0 : index
    %c0_9 = arith.constant 0 : index
    %10 = vector.load %arg5[%c0_7, %c0_8, %c0_9] : memref<1x2x128xf32, #tpu.memory_space<vmem>>, vector<1x2x128xf32>
    %11 = vector.shape_cast %10 : vector<1x2x128xf32> to vector<2x128xf32>
    %12 = vector.shape_cast %9 : vector<2x128xf32> to vector<1x2x128xf32>
    tpu.vector_store %arg5[%c0_7, %c0_8, %c0_9], %12 {strides = array<i32>} : memref<1x2x128xf32, #tpu.memory_space<vmem>>, vector<1x2x128xf32>,
    return
  }
  func.func @transform_0(%arg0: i32, %arg1: i32) -> (i32, i32) {
    %c0_i32 = arith.constant 0 : i32
    %c0_i32_0 = arith.constant 0 : i32
    return %arg0, %c0_i32 : i32, i32
  }
  func.func @transform_1(%arg0: i32, %arg1: i32) -> (i32, i32) {
    %c0_i32 = arith.constant 0 : i32
    %c0_i32_0 = arith.constant 0 : i32
    return %c0_i32, %arg1 : i32, i32
  }
  func.func @transform_2(%arg0: i32, %arg1: i32) -> (i32, i32) {
    %c0_i32 = arith.constant 0 : i32
    return %arg0, %arg1 : i32, i32
  }
  func.func @transform_3(%arg0: i32, %arg1: i32) -> (i32, i32, i32) {
    %c0_i32 = arith.constant 0 : i32
    %c0_i32_0 = arith.constant 0 : i32
    return %arg0, %c0_i32, %arg1 : i32, i32, i32
  }
}

</mosaic_0001>

<llo_original>
// kernel: conv_bn_relu.3
$region0: #{conv_bn_relu.3}
  #allocation0 [shape = 'u32[]', space=smem, size = 0x4, offset = 0x4, fixed_abs, tag = 'smem constant byte address 0x4 - core index']
  #allocation1 [shape = 'u32[144,128]{1,0:T(1,128)}', space=vmem, size = 0x12000, scoped, tag = 'internal scratch']
  %s0 = inlined_call_operand.vmem [shape: f32[512,128], index: 0, kind: input, shape index: {}]
  %s1 = inlined_call_operand.vmem [shape: f32[1,128], index: 1, kind: input, shape index: {}]
  %s2 = inlined_call_operand.vmem [shape: f32[1,128], index: 2, kind: input, shape index: {}]
  %s3 = inlined_call_operand.vmem [shape: f32[512,128], index: 3, kind: output, shape index: {}]
  %s4 = sld [smem:[#allocation0]]
  $region22: #{conv_bn_relu.3} parent=0
    _
  %s6 = ssub.s32 1, %s4
  %s7 = scalar_select 0, %s6, %s4
  // Predicated region
  $region2: #{conv_bn_relu.3} parent=0 // pred_check
    _
  $region3: #{conv_bn_relu.3} parent=0 // pred_check_branch
    %9 = sbr.rel (0) target = $region5
  $region4: #{conv_bn_relu.3} parent=0 // pred_region
    _
  $region5: #{conv_bn_relu.3} parent=0 // pred_fallthru
    _
  // Predicated region
  $region6: #{conv_bn_relu.3} parent=0 // pred_check
    _
  $region7: #{conv_bn_relu.3} parent=0 // pred_check_branch
    %11 = sbr.rel (0) target = $region9
  $region8: #{conv_bn_relu.3} parent=0 // pred_region
    _
  $region9: #{conv_bn_relu.3} parent=0 // pred_fallthru
    _
  // Predicated region
  $region10: #{conv_bn_relu.3} parent=0 // pred_check
    _
  $region11: #{conv_bn_relu.3} parent=0 // pred_check_branch
    %13 = sbr.rel (0) target = $region13
  $region12: #{conv_bn_relu.3} parent=0 // pred_region
    _
  $region13: #{conv_bn_relu.3} parent=0 // pred_fallthru
    _
  %v14 = vld [vmem:[%s0] sm:$0xff]
  %v15 = vld [vmem:[%s0 + $0x8] sm:$0xff]
  %v16 = vld [vmem:[%s0 + $0x10] sm:$0xff]
  %v17 = vld [vmem:[%s0 + $0x18] sm:$0xff]
  %v18 = vld [vmem:[%s0 + $0x20] sm:$0xff]
  %v19 = vld [vmem:[%s0 + $0x28] sm:$0xff]
  %v20 = vld [vmem:[%s0 + $0x30] sm:$0xff]
  %v21 = vld [vmem:[%s0 + $0x38] sm:$0xff]
  %v22 = vld [vmem:[%s0 + $0x40] sm:$0xff]
  %v23 = vld [vmem:[%s0 + $0x48] sm:$0xff]
  %v24 = vld [vmem:[%s0 + $0x50] sm:$0xff]
  %v25 = vld [vmem:[%s0 + $0x58] sm:$0xff]
  %v26 = vld [vmem:[%s0 + $0x60] sm:$0xff]
  %v27 = vld [vmem:[%s0 + $0x68] sm:$0xff]
  %v28 = vld [vmem:[%s0 + $0x70] sm:$0xff]
  %v29 = vld [vmem:[%s0 + $0x78] sm:$0xff]
  %v30 = vld [vmem:[%s0 + $0x80] sm:$0xff]
  %v31 = vld [vmem:[%s0 + $0x88] sm:$0xff]
  %v32 = vld [vmem:[%s0 + $0x90] sm:$0xff]
  %v33 = vld [vmem:[%s0 + $0x98] sm:$0xff]
  %v34 = vld [vmem:[%s0 + $0xa0] sm:$0xff]
  %v35 = vld [vmem:[%s0 + $0xa8] sm:$0xff]
  %v36 = vld [vmem:[%s0 + $0xb0] sm:$0xff]
  %v37 = vld [vmem:[%s0 + $0xb8] sm:$0xff]
  %v38 = vld [vmem:[%s0 + $0xc0] sm:$0xff]
  %v39 = vld [vmem:[%s0 + $0xc8] sm:$0xff]
  %v40 = vld [vmem:[%s0 + $0xd0] sm:$0xff]
  %v41 = vld [vmem:[%s0 + $0xd8] sm:$0xff]
  %v42 = vld [vmem:[%s0 + $0xe0] sm:$0xff]
  %v43 = vld [vmem:[%s0 + $0xe8] sm:$0xff]
  %v44 = vld [vmem:[%s0 + $0xf0] sm:$0xff]
  %v45 = vld [vmem:[%s0 + $0xf8] sm:$0xff]
  %v46 = vld [vmem:[%s0 + $0x100] sm:$0xff]
  %v47 = vld [vmem:[%s0 + $0x108] sm:$0xff]
  %v48 = vld [vmem:[%s0 + $0x110] sm:$0xff]
  %v49 = vld [vmem:[%s0 + $0x118] sm:$0xff]
  %v50 = vld [vmem:[%s0 + $0x120] sm:$0xff]
  %v51 = vld [vmem:[%s0 + $0x128] sm:$0xff]
  %v52 = vld [vmem:[%s0 + $0x130] sm:$0xff]
  %v53 = vld [vmem:[%s0 + $0x138] sm:$0xff]
  %v54 = vld [vmem:[%s0 + $0x140] sm:$0xff]
  %v55 = vld [vmem:[%s0 + $0x148] sm:$0xff]
  %v56 = vld [vmem:[%s0 + $0x150] sm:$0xff]
  %v57 = vld [vmem:[%s0 + $0x158] sm:$0xff]
  %v58 = vld [vmem:[%s0 + $0x160] sm:$0xff]
  %v59 = vld [vmem:[%s0 + $0x168] sm:$0xff]
  %v60 = vld [vmem:[%s0 + $0x170] sm:$0xff]
  %v61 = vld [vmem:[%s0 + $0x178] sm:$0xff]
  %v62 = vld [vmem:[%s0 + $0x180] sm:$0xff]
  %v63 = vld [vmem:[%s0 + $0x188] sm:$0xff]
  %v64 = vld [vmem:[%s0 + $0x190] sm:$0xff]
  %v65 = vld [vmem:[%s0 + $0x198] sm:$0xff]
  %v66 = vld [vmem:[%s0 + $0x1a0] sm:$0xff]
  %v67 = vld [vmem:[%s0 + $0x1a8] sm:$0xff]
  %v68 = vld [vmem:[%s0 + $0x1b0] sm:$0xff]
  %v69 = vld [vmem:[%s0 + $0x1b8] sm:$0xff]
  %v70 = vld [vmem:[%s0 + $0x1c0] sm:$0xff]
  %v71 = vld [vmem:[%s0 + $0x1c8] sm:$0xff]
  %v72 = vld [vmem:[%s0 + $0x1d0] sm:$0xff]
  %v73 = vld [vmem:[%s0 + $0x1d8] sm:$0xff]
  %v74 = vld [vmem:[%s0 + $0x1e0] sm:$0xff]
  %v75 = vld [vmem:[%s0 + $0x1e8] sm:$0xff]
  %v76 = vld [vmem:[%s0 + $0x1f0] sm:$0xff]
  %v77 = vld [vmem:[%s0 + $0x1f8] sm:$0xff]
  %v78 = vld [vmem:[%s1] sm:$0x1]
  %v80 = vlaneseq
  %v81 = vshrl.u32 %v80, 7
  %v82 = vsub.s32 0, %v81
  %v83 = vrot.slane %v78, %v82
  %v85 = vmul.f32 %v14, %v83
  %v86 = vmul.f32 %v15, %v83
  %v87 = vmul.f32 %v16, %v83
  %v88 = vmul.f32 %v17, %v83
  %v89 = vmul.f32 %v18, %v83
  %v90 = vmul.f32 %v19, %v83
  %v91 = vmul.f32 %v20, %v83
  %v92 = vmul.f32 %v21, %v83
  %v93 = vmul.f32 %v22, %v83
  %v94 = vmul.f32 %v23, %v83
  %v95 = vmul.f32 %v24, %v83
  %v96 = vmul.f32 %v25, %v83
  %v97 = vmul.f32 %v26, %v83
  %v98 = vmul.f32 %v27, %v83
  %v99 = vmul.f32 %v28, %v83
  %v100 = vmul.f32 %v29, %v83
  %v101 = vmul.f32 %v30, %v83
  %v102 = vmul.f32 %v31, %v83
  %v103 = vmul.f32 %v32, %v83
  %v104 = vmul.f32 %v33, %v83
  %v105 = vmul.f32 %v34, %v83
  %v106 = vmul.f32 %v35, %v83
  %v107 = vmul.f32 %v36, %v83
  %v108 = vmul.f32 %v37, %v83
  %v109 = vmul.f32 %v38, %v83
  %v110 = vmul.f32 %v39, %v83
  %v111 = vmul.f32 %v40, %v83
  %v112 = vmul.f32 %v41, %v83
  %v113 = vmul.f32 %v42, %v83
  %v114 = vmul.f32 %v43, %v83
  %v115 = vmul.f32 %v44, %v83
  %v116 = vmul.f32 %v45, %v83
  %v117 = vmul.f32 %v46, %v83
  %v118 = vmul.f32 %v47, %v83
  %v119 = vmul.f32 %v48, %v83
  %v120 = vmul.f32 %v49, %v83
  %v121 = vmul.f32 %v50, %v83
  %v122 = vmul.f32 %v51, %v83
  %v123 = vmul.f32 %v52, %v83
  %v124 = vmul.f32 %v53, %v83
  %v125 = vmul.f32 %v54, %v83
  %v126 = vmul.f32 %v55, %v83
  %v127 = vmul.f32 %v56, %v83
  %v128 = vmul.f32 %v57, %v83
  %v129 = vmul.f32 %v58, %v83
  %v130 = vmul.f32 %v59, %v83
  %v131 = vmul.f32 %v60, %v83
  %v132 = vmul.f32 %v61, %v83
  %v133 = vmul.f32 %v62, %v83
  %v134 = vmul.f32 %v63, %v83
  %v135 = vmul.f32 %v64, %v83
  %v136 = vmul.f32 %v65, %v83
  %v137 = vmul.f32 %v66, %v83
  %v138 = vmul.f32 %v67, %v83
  %v139 = vmul.f32 %v68, %v83
  %v140 = vmul.f32 %v69, %v83
  %v141 = vmul.f32 %v70, %v83
  %v142 = vmul.f32 %v71, %v83
  %v143 = vmul.f32 %v72, %v83
  %v144 = vmul.f32 %v73, %v83
  %v145 = vmul.f32 %v74, %v83
  %v146 = vmul.f32 %v75, %v83
  %v147 = vmul.f32 %v76, %v83
  %v148 = vmul.f32 %v77, %v83
  %v149 = vld [vmem:[%s2] sm:$0x1]
  %v151 = vlaneseq
  %v152 = vshrl.u32 %v151, 7
  %v153 = vsub.s32 0, %v152
  %v154 = vrot.slane %v149, %v153
  %v156 = vadd.f32 %v85, %v154
  %v157 = vadd.f32 %v86, %v154
  %v158 = vadd.f32 %v87, %v154
  %v159 = vadd.f32 %v88, %v154
  %v160 = vadd.f32 %v89, %v154
  %v161 = vadd.f32 %v90, %v154
  %v162 = vadd.f32 %v91, %v154
  %v163 = vadd.f32 %v92, %v154
  %v164 = vadd.f32 %v93, %v154
  %v165 = vadd.f32 %v94, %v154
  %v166 = vadd.f32 %v95, %v154
  %v167 = vadd.f32 %v96, %v154
  %v168 = vadd.f32 %v97, %v154
  %v169 = vadd.f32 %v98, %v154
  %v170 = vadd.f32 %v99, %v154
  %v171 = vadd.f32 %v100, %v154
  %v172 = vadd.f32 %v101, %v154
  %v173 = vadd.f32 %v102, %v154
  %v174 = vadd.f32 %v103, %v154
  %v175 = vadd.f32 %v104, %v154
  %v176 = vadd.f32 %v105, %v154
  %v177 = vadd.f32 %v106, %v154
  %v178 = vadd.f32 %v107, %v154
  %v179 = vadd.f32 %v108, %v154
  %v180 = vadd.f32 %v109, %v154
  %v181 = vadd.f32 %v110, %v154
  %v182 = vadd.f32 %v111, %v154
  %v183 = vadd.f32 %v112, %v154
  %v184 = vadd.f32 %v113, %v154
  %v185 = vadd.f32 %v114, %v154
  %v186 = vadd.f32 %v115, %v154
  %v187 = vadd.f32 %v116, %v154
  %v188 = vadd.f32 %v117, %v154
  %v189 = vadd.f32 %v118, %v154
  %v190 = vadd.f32 %v119, %v154
  %v191 = vadd.f32 %v120, %v154
  %v192 = vadd.f32 %v121, %v154
  %v193 = vadd.f32 %v122, %v154
  %v194 = vadd.f32 %v123, %v154
  %v195 = vadd.f32 %v124, %v154
  %v196 = vadd.f32 %v125, %v154
  %v197 = vadd.f32 %v126, %v154
  %v198 = vadd.f32 %v127, %v154
  %v199 = vadd.f32 %v128, %v154
  %v200 = vadd.f32 %v129, %v154
  %v201 = vadd.f32 %v130, %v154
  %v202 = vadd.f32 %v131, %v154
  %v203 = vadd.f32 %v132, %v154
  %v204 = vadd.f32 %v133, %v154
  %v205 = vadd.f32 %v134, %v154
  %v206 = vadd.f32 %v135, %v154
  %v207 = vadd.f32 %v136, %v154
  %v208 = vadd.f32 %v137, %v154
  %v209 = vadd.f32 %v138, %v154
  %v210 = vadd.f32 %v139, %v154
  %v211 = vadd.f32 %v140, %v154
  %v212 = vadd.f32 %v141, %v154
  %v213 = vadd.f32 %v142, %v154
  %v214 = vadd.f32 %v143, %v154
  %v215 = vadd.f32 %v144, %v154
  %v216 = vadd.f32 %v145, %v154
  %v217 = vadd.f32 %v146, %v154
  %v218 = vadd.f32 %v147, %v154
  %v219 = vadd.f32 %v148, %v154
  %v220 = vmax.f32 %v156, 0.0
  %v221 = vmax.f32 %v157, 0.0
  %v222 = vmax.f32 %v158, 0.0
  %v223 = vmax.f32 %v159, 0.0
  %v224 = vmax.f32 %v160, 0.0
  %v225 = vmax.f32 %v161, 0.0
  %v226 = vmax.f32 %v162, 0.0
  %v227 = vmax.f32 %v163, 0.0
  %v228 = vmax.f32 %v164, 0.0
  %v229 = vmax.f32 %v165, 0.0
  %v230 = vmax.f32 %v166, 0.0
  %v231 = vmax.f32 %v167, 0.0
  %v232 = vmax.f32 %v168, 0.0
  %v233 = vmax.f32 %v169, 0.0
  %v234 = vmax.f32 %v170, 0.0
  %v235 = vmax.f32 %v171, 0.0
  %v236 = vmax.f32 %v172, 0.0
  %v237 = vmax.f32 %v173, 0.0
  %v238 = vmax.f32 %v174, 0.0
  %v239 = vmax.f32 %v175, 0.0
  %v240 = vmax.f32 %v176, 0.0
  %v241 = vmax.f32 %v177, 0.0
  %v242 = vmax.f32 %v178, 0.0
  %v243 = vmax.f32 %v179, 0.0
  %v244 = vmax.f32 %v180, 0.0
  %v245 = vmax.f32 %v181, 0.0
  %v246 = vmax.f32 %v182, 0.0
  %v247 = vmax.f32 %v183, 0.0
  %v248 = vmax.f32 %v184, 0.0
  %v249 = vmax.f32 %v185, 0.0
  %v250 = vmax.f32 %v186, 0.0
  %v251 = vmax.f32 %v187, 0.0
  %v252 = vmax.f32 %v188, 0.0
  %v253 = vmax.f32 %v189, 0.0
  %v254 = vmax.f32 %v190, 0.0
  %v255 = vmax.f32 %v191, 0.0
  %v256 = vmax.f32 %v192, 0.0
  %v257 = vmax.f32 %v193, 0.0
  %v258 = vmax.f32 %v194, 0.0
  %v259 = vmax.f32 %v195, 0.0
  %v260 = vmax.f32 %v196, 0.0
  %v261 = vmax.f32 %v197, 0.0
  %v262 = vmax.f32 %v198, 0.0
  %v263 = vmax.f32 %v199, 0.0
  %v264 = vmax.f32 %v200, 0.0
  %v265 = vmax.f32 %v201, 0.0
  %v266 = vmax.f32 %v202, 0.0
  %v267 = vmax.f32 %v203, 0.0
  %v268 = vmax.f32 %v204, 0.0
  %v269 = vmax.f32 %v205, 0.0
  %v270 = vmax.f32 %v206, 0.0
  %v271 = vmax.f32 %v207, 0.0
  %v272 = vmax.f32 %v208, 0.0
  %v273 = vmax.f32 %v209, 0.0
  %v274 = vmax.f32 %v210, 0.0
  %v275 = vmax.f32 %v211, 0.0
  %v276 = vmax.f32 %v212, 0.0
  %v277 = vmax.f32 %v213, 0.0
  %v278 = vmax.f32 %v214, 0.0
  %v279 = vmax.f32 %v215, 0.0
  %v280 = vmax.f32 %v216, 0.0
  %v281 = vmax.f32 %v217, 0.0
  %v282 = vmax.f32 %v218, 0.0
  %v283 = vmax.f32 %v219, 0.0
  %284 = vst [vmem:[%s3] sm:$0xff] %v220
  %285 = vst [vmem:[%s3 + $0x8] sm:$0xff] %v221
  %286 = vst [vmem:[%s3 + $0x10] sm:$0xff] %v222
  %287 = vst [vmem:[%s3 + $0x18] sm:$0xff] %v223
  %288 = vst [vmem:[%s3 + $0x20] sm:$0xff] %v224
  %289 = vst [vmem:[%s3 + $0x28] sm:$0xff] %v225
  %290 = vst [vmem:[%s3 + $0x30] sm:$0xff] %v226
  %291 = vst [vmem:[%s3 + $0x38] sm:$0xff] %v227
  %292 = vst [vmem:[%s3 + $0x40] sm:$0xff] %v228
  %293 = vst [vmem:[%s3 + $0x48] sm:$0xff] %v229
  %294 = vst [vmem:[%s3 + $0x50] sm:$0xff] %v230
  %295 = vst [vmem:[%s3 + $0x58] sm:$0xff] %v231
  %296 = vst [vmem:[%s3 + $0x60] sm:$0xff] %v232
  %297 = vst [vmem:[%s3 + $0x68] sm:$0xff] %v233
  %298 = vst [vmem:[%s3 + $0x70] sm:$0xff] %v234
  %299 = vst [vmem:[%s3 + $0x78] sm:$0xff] %v235
  %300 = vst [vmem:[%s3 + $0x80] sm:$0xff] %v236
  %301 = vst [vmem:[%s3 + $0x88] sm:$0xff] %v237
  %302 = vst [vmem:[%s3 + $0x90] sm:$0xff] %v238
  %303 = vst [vmem:[%s3 + $0x98] sm:$0xff] %v239
  %304 = vst [vmem:[%s3 + $0xa0] sm:$0xff] %v240
  %305 = vst [vmem:[%s3 + $0xa8] sm:$0xff] %v241
  %306 = vst [vmem:[%s3 + $0xb0] sm:$0xff] %v242
  %307 = vst [vmem:[%s3 + $0xb8] sm:$0xff] %v243
  %308 = vst [vmem:[%s3 + $0xc0] sm:$0xff] %v244
  %309 = vst [vmem:[%s3 + $0xc8] sm:$0xff] %v245
  %310 = vst [vmem:[%s3 + $0xd0] sm:$0xff] %v246
  %311 = vst [vmem:[%s3 + $0xd8] sm:$0xff] %v247
  %312 = vst [vmem:[%s3 + $0xe0] sm:$0xff] %v248
  %313 = vst [vmem:[%s3 + $0xe8] sm:$0xff] %v249
  %314 = vst [vmem:[%s3 + $0xf0] sm:$0xff] %v250
  %315 = vst [vmem:[%s3 + $0xf8] sm:$0xff] %v251
  %316 = vst [vmem:[%s3 + $0x100] sm:$0xff] %v252
  %317 = vst [vmem:[%s3 + $0x108] sm:$0xff] %v253
  %318 = vst [vmem:[%s3 + $0x110] sm:$0xff] %v254
  %319 = vst [vmem:[%s3 + $0x118] sm:$0xff] %v255
  %320 = vst [vmem:[%s3 + $0x120] sm:$0xff] %v256
  %321 = vst [vmem:[%s3 + $0x128] sm:$0xff] %v257
  %322 = vst [vmem:[%s3 + $0x130] sm:$0xff] %v258
  %323 = vst [vmem:[%s3 + $0x138] sm:$0xff] %v259
  %324 = vst [vmem:[%s3 + $0x140] sm:$0xff] %v260
  %325 = vst [vmem:[%s3 + $0x148] sm:$0xff] %v261
  %326 = vst [vmem:[%s3 + $0x150] sm:$0xff] %v262
  %327 = vst [vmem:[%s3 + $0x158] sm:$0xff] %v263
  %328 = vst [vmem:[%s3 + $0x160] sm:$0xff] %v264
  %329 = vst [vmem:[%s3 + $0x168] sm:$0xff] %v265
  %330 = vst [vmem:[%s3 + $0x170] sm:$0xff] %v266
  %331 = vst [vmem:[%s3 + $0x178] sm:$0xff] %v267
  %332 = vst [vmem:[%s3 + $0x180] sm:$0xff] %v268
  %333 = vst [vmem:[%s3 + $0x188] sm:$0xff] %v269
  %334 = vst [vmem:[%s3 + $0x190] sm:$0xff] %v270
  %335 = vst [vmem:[%s3 + $0x198] sm:$0xff] %v271
  %336 = vst [vmem:[%s3 + $0x1a0] sm:$0xff] %v272
  %337 = vst [vmem:[%s3 + $0x1a8] sm:$0xff] %v273
  %338 = vst [vmem:[%s3 + $0x1b0] sm:$0xff] %v274
  %339 = vst [vmem:[%s3 + $0x1b8] sm:$0xff] %v275
  %340 = vst [vmem:[%s3 + $0x1c0] sm:$0xff] %v276
  %341 = vst [vmem:[%s3 + $0x1c8] sm:$0xff] %v277
  %342 = vst [vmem:[%s3 + $0x1d0] sm:$0xff] %v278
  %343 = vst [vmem:[%s3 + $0x1d8] sm:$0xff] %v279
  %344 = vst [vmem:[%s3 + $0x1e0] sm:$0xff] %v280
  %345 = vst [vmem:[%s3 + $0x1e8] sm:$0xff] %v281
  %346 = vst [vmem:[%s3 + $0x1f0] sm:$0xff] %v282
  %347 = vst [vmem:[%s3 + $0x1f8] sm:$0xff] %v283
  // Predicated region
  $region14: #{conv_bn_relu.3} parent=0 // pred_check
    _
  $region15: #{conv_bn_relu.3} parent=0 // pred_check_branch
    %349 = sbr.rel (0) target = $region17
  $region16: #{conv_bn_relu.3} parent=0 // pred_region
    _
  $region17: #{conv_bn_relu.3} parent=0 // pred_fallthru
    _
  // Predicated region
  $region18: #{conv_bn_relu.3} parent=0 // pred_check
    _
  $region19: #{conv_bn_relu.3} parent=0 // pred_check_branch
    %351 = sbr.rel (0) target = $region21
  $region20: #{conv_bn_relu.3} parent=0 // pred_region
    _
  $region21: #{conv_bn_relu.3} parent=0 // pred_fallthru
    _

// kernel: conv_bn_relu.2
$region0: #{conv_bn_relu.2}
  #allocation0 [shape = 'u32[]', space=smem, size = 0x4, offset = 0x4, fixed_abs, tag = 'smem constant byte address 0x4 - core index']
  #allocation1 [shape = 'u32[144,128]{1,0:T(1,128)}', space=vmem, size = 0x12000, scoped, tag = 'internal scratch']
  %s0 = inlined_call_operand.vmem [shape: bf16[512,128], index: 0, kind: input, shape index: {}]
  %s1 = inlined_call_operand.vmem [shape: bf16[128,128], index: 1, kind: input, shape index: {}]
  %s2 = inlined_call_operand.vmem [shape: f32[512,128], index: 2, kind: output, shape index: {0}]
  %s3 = inlined_call_operand.vmem [shape: f32[1,2,128], index: 3, kind: output, shape index: {1}]
  %4 = xla_tuple %s2, %s3
  %s5 = sld [smem:[#allocation0]]
  $region26: #{conv_bn_relu.2} parent=0
    _
  %s7 = ssub.s32 1, %s5
  %s8 = scalar_select 0, %s7, %s5
  // Predicated region
  $region2: #{conv_bn_relu.2} parent=0 // pred_check
    _
  $region3: #{conv_bn_relu.2} parent=0 // pred_check_branch
    %10 = sbr.rel (0) target = $region5
  $region4: #{conv_bn_relu.2} parent=0 // pred_region
    _
  $region5: #{conv_bn_relu.2} parent=0 // pred_fallthru
    _
  // Predicated region
  $region6: #{conv_bn_relu.2} parent=0 // pred_check
    _
  $region7: #{conv_bn_relu.2} parent=0 // pred_check_branch
    %12 = sbr.rel (0) target = $region9
  $region8: #{conv_bn_relu.2} parent=0 // pred_region
    _
  $region9: #{conv_bn_relu.2} parent=0 // pred_fallthru
    _
  %v14 = vld [vmem:[%s0] sm:$0xf]
  %v15 = vld [vmem:[%s0 + $0x4] sm:$0xf]
  %v16 = vld [vmem:[%s0 + $0x8] sm:$0xf]
  %v17 = vld [vmem:[%s0 + $0xc] sm:$0xf]
  %v18 = vld [vmem:[%s0 + $0x10] sm:$0xf]
  %v19 = vld [vmem:[%s0 + $0x14] sm:$0xf]
  %v20 = vld [vmem:[%s0 + $0x18] sm:$0xf]
  %v21 = vld [vmem:[%s0 + $0x1c] sm:$0xf]
  %v22 = vld [vmem:[%s0 + $0x20] sm:$0xf]
  %v23 = vld [vmem:[%s0 + $0x24] sm:$0xf]
  %v24 = vld [vmem:[%s0 + $0x28] sm:$0xf]
  %v25 = vld [vmem:[%s0 + $0x2c] sm:$0xf]
  %v26 = vld [vmem:[%s0 + $0x30] sm:$0xf]
  %v27 = vld [vmem:[%s0 + $0x34] sm:$0xf]
  %v28 = vld [vmem:[%s0 + $0x38] sm:$0xf]
  %v29 = vld [vmem:[%s0 + $0x3c] sm:$0xf]
  %v30 = vld [vmem:[%s0 + $0x40] sm:$0xf]
  %v31 = vld [vmem:[%s0 + $0x44] sm:$0xf]
  %v32 = vld [vmem:[%s0 + $0x48] sm:$0xf]
  %v33 = vld [vmem:[%s0 + $0x4c] sm:$0xf]
  %v34 = vld [vmem:[%s0 + $0x50] sm:$0xf]
  %v35 = vld [vmem:[%s0 + $0x54] sm:$0xf]
  %v36 = vld [vmem:[%s0 + $0x58] sm:$0xf]
  %v37 = vld [vmem:[%s0 + $0x5c] sm:$0xf]
  %v38 = vld [vmem:[%s0 + $0x60] sm:$0xf]
  %v39 = vld [vmem:[%s0 + $0x64] sm:$0xf]
  %v40 = vld [vmem:[%s0 + $0x68] sm:$0xf]
  %v41 = vld [vmem:[%s0 + $0x6c] sm:$0xf]
  %v42 = vld [vmem:[%s0 + $0x70] sm:$0xf]
  %v43 = vld [vmem:[%s0 + $0x74] sm:$0xf]
  %v44 = vld [vmem:[%s0 + $0x78] sm:$0xf]
  %v45 = vld [vmem:[%s0 + $0x7c] sm:$0xf]
  %v46 = vld [vmem:[%s0 + $0x80] sm:$0xf]
  %v47 = vld [vmem:[%s0 + $0x84] sm:$0xf]
  %v48 = vld [vmem:[%s0 + $0x88] sm:$0xf]
  %v49 = vld [vmem:[%s0 + $0x8c] sm:$0xf]
  %v50 = vld [vmem:[%s0 + $0x90] sm:$0xf]
  %v51 = vld [vmem:[%s0 + $0x94] sm:$0xf]
  %v52 = vld [vmem:[%s0 + $0x98] sm:$0xf]
  %v53 = vld [vmem:[%s0 + $0x9c] sm:$0xf]
  %v54 = vld [vmem:[%s0 + $0xa0] sm:$0xf]
  %v55 = vld [vmem:[%s0 + $0xa4] sm:$0xf]
  %v56 = vld [vmem:[%s0 + $0xa8] sm:$0xf]
  %v57 = vld [vmem:[%s0 + $0xac] sm:$0xf]
  %v58 = vld [vmem:[%s0 + $0xb0] sm:$0xf]
  %v59 = vld [vmem:[%s0 + $0xb4] sm:$0xf]
  %v60 = vld [vmem:[%s0 + $0xb8] sm:$0xf]
  %v61 = vld [vmem:[%s0 + $0xbc] sm:$0xf]
  %v62 = vld [vmem:[%s0 + $0xc0] sm:$0xf]
  %v63 = vld [vmem:[%s0 + $0xc4] sm:$0xf]
  %v64 = vld [vmem:[%s0 + $0xc8] sm:$0xf]
  %v65 = vld [vmem:[%s0 + $0xcc] sm:$0xf]
  %v66 = vld [vmem:[%s0 + $0xd0] sm:$0xf]
  %v67 = vld [vmem:[%s0 + $0xd4] sm:$0xf]
  %v68 = vld [vmem:[%s0 + $0xd8] sm:$0xf]
  %v69 = vld [vmem:[%s0 + $0xdc] sm:$0xf]
  %v70 = vld [vmem:[%s0 + $0xe0] sm:$0xf]
  %v71 = vld [vmem:[%s0 + $0xe4] sm:$0xf]
  %v72 = vld [vmem:[%s0 + $0xe8] sm:$0xf]
  %v73 = vld [vmem:[%s0 + $0xec] sm:$0xf]
  %v74 = vld [vmem:[%s0 + $0xf0] sm:$0xf]
  %v75 = vld [vmem:[%s0 + $0xf4] sm:$0xf]
  %v76 = vld [vmem:[%s0 + $0xf8] sm:$0xf]
  %v77 = vld [vmem:[%s0 + $0xfc] sm:$0xf]
  %v78 = vld [vmem:[%s1] sm:$0xf]
  %v79 = vld [vmem:[%s1 + $0x4] sm:$0xf]
  %v80 = vld [vmem:[%s1 + $0x8] sm:$0xf]
  %v81 = vld [vmem:[%s1 + $0xc] sm:$0xf]
  %v82 = vld [vmem:[%s1 + $0x10] sm:$0xf]
  %v83 = vld [vmem:[%s1 + $0x14] sm:$0xf]
  %v84 = vld [vmem:[%s1 + $0x18] sm:$0xf]
  %v85 = vld [vmem:[%s1 + $0x1c] sm:$0xf]
  %v86 = vld [vmem:[%s1 + $0x20] sm:$0xf]
  %v87 = vld [vmem:[%s1 + $0x24] sm:$0xf]
  %v88 = vld [vmem:[%s1 + $0x28] sm:$0xf]
  %v89 = vld [vmem:[%s1 + $0x2c] sm:$0xf]
  %v90 = vld [vmem:[%s1 + $0x30] sm:$0xf]
  %v91 = vld [vmem:[%s1 + $0x34] sm:$0xf]
  %v92 = vld [vmem:[%s1 + $0x38] sm:$0xf]
  %v93 = vld [vmem:[%s1 + $0x3c] sm:$0xf]
  %v158 = vunpack.c.l.b16 %v14
  %v159 = vunpack.c.l.b16 %v15
  %v160 = vunpack.c.l.b16 %v16
  %v161 = vunpack.c.l.b16 %v17
  %v162 = vunpack.c.l.b16 %v18
  %v163 = vunpack.c.l.b16 %v19
  %v164 = vunpack.c.l.b16 %v20
  %v165 = vunpack.c.l.b16 %v21
  %v166 = vunpack.c.l.b16 %v22
  %v167 = vunpack.c.l.b16 %v23
  %v168 = vunpack.c.l.b16 %v24
  %v169 = vunpack.c.l.b16 %v25
  %v170 = vunpack.c.l.b16 %v26
  %v171 = vunpack.c.l.b16 %v27
  %v172 = vunpack.c.l.b16 %v28
  %v173 = vunpack.c.l.b16 %v29
  %v174 = vunpack.c.l.b16 %v30
  %v175 = vunpack.c.l.b16 %v31
  %v176 = vunpack.c.l.b16 %v32
  %v177 = vunpack.c.l.b16 %v33
  %v178 = vunpack.c.l.b16 %v34
  %v179 = vunpack.c.l.b16 %v35
  %v180 = vunpack.c.l.b16 %v36
  %v181 = vunpack.c.l.b16 %v37
  %v182 = vunpack.c.l.b16 %v38
  %v183 = vunpack.c.l.b16 %v39
  %v184 = vunpack.c.l.b16 %v40
  %v185 = vunpack.c.l.b16 %v41
  %v186 = vunpack.c.l.b16 %v42
  %v187 = vunpack.c.l.b16 %v43
  %v188 = vunpack.c.l.b16 %v44
  %v189 = vunpack.c.l.b16 %v45
  %v190 = vunpack.c.l.b16 %v46
  %v191 = vunpack.c.l.b16 %v47
  %v192 = vunpack.c.l.b16 %v48
  %v193 = vunpack.c.l.b16 %v49
  %v194 = vunpack.c.l.b16 %v50
  %v195 = vunpack.c.l.b16 %v51
  %v196 = vunpack.c.l.b16 %v52
  %v197 = vunpack.c.l.b16 %v53
  %v198 = vunpack.c.l.b16 %v54
  %v199 = vunpack.c.l.b16 %v55
  %v200 = vunpack.c.l.b16 %v56
  %v201 = vunpack.c.l.b16 %v57
  %v202 = vunpack.c.l.b16 %v58
  %v203 = vunpack.c.l.b16 %v59
  %v204 = vunpack.c.l.b16 %v60
  %v205 = vunpack.c.l.b16 %v61
  %v206 = vunpack.c.l.b16 %v62
  %v207 = vunpack.c.l.b16 %v63
  %v208 = vunpack.c.l.b16 %v64
  %v209 = vunpack.c.l.b16 %v65
  %v210 = vunpack.c.l.b16 %v66
  %v211 = vunpack.c.l.b16 %v67
  %v212 = vunpack.c.l.b16 %v68
  %v213 = vunpack.c.l.b16 %v69
  %v214 = vunpack.c.l.b16 %v70
  %v215 = vunpack.c.l.b16 %v71
  %v216 = vunpack.c.l.b16 %v72
  %v217 = vunpack.c.l.b16 %v73
  %v218 = vunpack.c.l.b16 %v74
  %v219 = vunpack.c.l.b16 %v75
  %v220 = vunpack.c.l.b16 %v76
  %v221 = vunpack.c.l.b16 %v77
  %v222 = vpack.c.b16 %v159, %v158
  %v223 = vpack.c.b16 %v161, %v160
  %v224 = vpack.c.b16 %v163, %v162
  %v225 = vpack.c.b16 %v165, %v164
  %v226 = vpack.c.b16 %v167, %v166
  %v227 = vpack.c.b16 %v169, %v168
  %v228 = vpack.c.b16 %v171, %v170
  %v229 = vpack.c.b16 %v173, %v172
  %v230 = vpack.c.b16 %v175, %v174
  %v231 = vpack.c.b16 %v177, %v176
  %v232 = vpack.c.b16 %v179, %v178
  %v233 = vpack.c.b16 %v181, %v180
  %v234 = vpack.c.b16 %v183, %v182
  %v235 = vpack.c.b16 %v185, %v184
  %v236 = vpack.c.b16 %v187, %v186
  %v237 = vpack.c.b16 %v189, %v188
  %v238 = vpack.c.b16 %v191, %v190
  %v239 = vpack.c.b16 %v193, %v192
  %v240 = vpack.c.b16 %v195, %v194
  %v241 = vpack.c.b16 %v197, %v196
  %v242 = vpack.c.b16 %v199, %v198
  %v243 = vpack.c.b16 %v201, %v200
  %v244 = vpack.c.b16 %v203, %v202
  %v245 = vpack.c.b16 %v205, %v204
  %v246 = vpack.c.b16 %v207, %v206
  %v247 = vpack.c.b16 %v209, %v208
  %v248 = vpack.c.b16 %v211, %v210
  %v249 = vpack.c.b16 %v213, %v212
  %v250 = vpack.c.b16 %v215, %v214
  %v251 = vpack.c.b16 %v217, %v216
  %v252 = vpack.c.b16 %v219, %v218
  %v253 = vpack.c.b16 %v221, %v220
  %v302 = vunpack.c.l.b16 %v78
  %v303 = vunpack.c.l.b16 %v79
  %v304 = vunpack.c.l.b16 %v80
  %v305 = vunpack.c.l.b16 %v81
  %v306 = vunpack.c.l.b16 %v82
  %v307 = vunpack.c.l.b16 %v83
  %v308 = vunpack.c.l.b16 %v84
  %v309 = vunpack.c.l.b16 %v85
  %v310 = vunpack.c.l.b16 %v86
  %v311 = vunpack.c.l.b16 %v87
  %v312 = vunpack.c.l.b16 %v88
  %v313 = vunpack.c.l.b16 %v89
  %v314 = vunpack.c.l.b16 %v90
  %v315 = vunpack.c.l.b16 %v91
  %v316 = vunpack.c.l.b16 %v92
  %v317 = vunpack.c.l.b16 %v93
  %v318 = vpack.c.b16 %v303, %v302
  %v319 = vpack.c.b16 %v305, %v304
  %v320 = vpack.c.b16 %v307, %v306
  %v321 = vpack.c.b16 %v309, %v308
  %v322 = vpack.c.b16 %v311, %v310
  %v323 = vpack.c.b16 %v313, %v312
  %v324 = vpack.c.b16 %v315, %v314
  %v325 = vpack.c.b16 %v317, %v316
  %334 = vmatprep.subr.bf16.mxu0 0
  %335 = vmatpush1.bf16.msra.mxu0 %v325
  %336 = vmatprep.subr.bf16.mxu0 0
  %337 = vmatpush1.bf16.msra.mxu0 %v324
  %338 = vmatprep.subr.bf16.mxu0 0
  %339 = vmatpush1.bf16.msra.mxu0 %v323
  %340 = vmatprep.subr.bf16.mxu0 0
  %341 = vmatpush1.bf16.msra.mxu0 %v322
  %342 = vmatprep.subr.bf16.mxu0 0
  %343 = vmatpush1.bf16.msra.mxu0 %v321
  %344 = vmatprep.subr.bf16.mxu0 0
  %345 = vmatpush1.bf16.msra.mxu0 %v320
  %346 = vmatprep.subr.bf16.mxu0 0
  %347 = vmatpush1.bf16.msra.mxu0 %v319
  %348 = vmatprep.subr.bf16.mxu0 0
  %349 = vmatpush1.bf16.msra.mxu0 %v318
  %350 = vmatprep.subr.bf16.mxu0 0
  %351 = vmatpush2.bf16.msra.mxu0 0
  %352 = vmatprep.subr.bf16.mxu0 0
  %353 = vmatpush2.bf16.msra.mxu0 0
  %354 = vmatprep.subr.bf16.mxu0 0
  %355 = vmatpush2.bf16.msra.mxu0 0
  %356 = vmatprep.subr.bf16.mxu0 0
  %357 = vmatpush2.bf16.msra.mxu0 0
  %358 = vmatprep.subr.bf16.mxu0 0
  %359 = vmatpush2.bf16.msra.mxu0 0
  %360 = vmatprep.subr.bf16.mxu0 0
  %361 = vmatpush2.bf16.msra.mxu0 0
  %362 = vmatprep.subr.bf16.mxu0 0
  %363 = vmatpush2.bf16.msra.mxu0 0
  %364 = vmatprep.subr.bf16.mxu0 0
  %365 = vmatpush2.bf16.msra.mxu0 0
  %366 = vmatprep.mubr.bf16.mxu0 0
  %367 = vmatmul.mubr.bf16.gmra.mxu0 %v222
  %v368 = vpop.f32.mrf.mxu0
  %v369 = vadd.f32 0.0, %v368
  %v370 = vpop.f32.mrf.mxu0
  %v371 = vpop.f32.mrf.mxu0
  %v372 = vadd.f32 0.0, %v371
  %v373 = vpop.f32.mrf.mxu0
  %374 = vmatprep.mubr.bf16.mxu0 0
  %375 = vmatmul.mubr.bf16.gmra.mxu0 %v223
  %v376 = vpop.f32.mrf.mxu0
  %v377 = vadd.f32 0.0, %v376
  %v378 = vpop.f32.mrf.mxu0
  %v379 = vpop.f32.mrf.mxu0
  %v380 = vadd.f32 0.0, %v379
  %v381 = vpop.f32.mrf.mxu0
  %382 = vmatprep.mubr.bf16.mxu0 0
  %383 = vmatmul.mubr.bf16.gmra.mxu0 %v224
  %v384 = vpop.f32.mrf.mxu0
  %v385 = vadd.f32 0.0, %v384
  %v386 = vpop.f32.mrf.mxu0
  %v387 = vpop.f32.mrf.mxu0
  %v388 = vadd.f32 0.0, %v387
  %v389 = vpop.f32.mrf.mxu0
  %390 = vmatprep.mubr.bf16.mxu0 0
  %391 = vmatmul.mubr.bf16.gmra.mxu0 %v225
  %v392 = vpop.f32.mrf.mxu0
  %v393 = vadd.f32 0.0, %v392
  %v394 = vpop.f32.mrf.mxu0
  %v395 = vpop.f32.mrf.mxu0
  %v396 = vadd.f32 0.0, %v395
  %v397 = vpop.f32.mrf.mxu0
  %398 = vmatprep.mubr.bf16.mxu0 0
  %399 = vmatmul.mubr.bf16.gmra.mxu0 %v226
  %v400 = vpop.f32.mrf.mxu0
  %v401 = vadd.f32 0.0, %v400
  %v402 = vpop.f32.mrf.mxu0
  %v403 = vpop.f32.mrf.mxu0
  %v404 = vadd.f32 0.0, %v403
  %v405 = vpop.f32.mrf.mxu0
  %406 = vmatprep.mubr.bf16.mxu0 0
  %407 = vmatmul.mubr.bf16.gmra.mxu0 %v227
  %v408 = vpop.f32.mrf.mxu0
  %v409 = vadd.f32 0.0, %v408
  %v410 = vpop.f32.mrf.mxu0
  %v411 = vpop.f32.mrf.mxu0
  %v412 = vadd.f32 0.0, %v411
  %v413 = vpop.f32.mrf.mxu0
  %414 = vmatprep.mubr.bf16.mxu0 0
  %415 = vmatmul.mubr.bf16.gmra.mxu0 %v228
  %v416 = vpop.f32.mrf.mxu0
  %v417 = vadd.f32 0.0, %v416
  %v418 = vpop.f32.mrf.mxu0
  %v419 = vpop.f32.mrf.mxu0
  %v420 = vadd.f32 0.0, %v419
  %v421 = vpop.f32.mrf.mxu0
  %422 = vmatprep.mubr.bf16.mxu0 0
  %423 = vmatmul.mubr.bf16.gmra.mxu0 %v229
  %v424 = vpop.f32.mrf.mxu0
  %v425 = vadd.f32 0.0, %v424
  %v426 = vpop.f32.mrf.mxu0
  %v427 = vpop.f32.mrf.mxu0
  %v428 = vadd.f32 0.0, %v427
  %v429 = vpop.f32.mrf.mxu0
  %430 = vmatprep.mubr.bf16.mxu0 0
  %431 = vmatmul.mubr.bf16.gmra.mxu0 %v230
  %v432 = vpop.f32.mrf.mxu0
  %v433 = vadd.f32 0.0, %v432
  %v434 = vpop.f32.mrf.mxu0
  %v435 = vpop.f32.mrf.mxu0
  %v436 = vadd.f32 0.0, %v435
  %v437 = vpop.f32.mrf.mxu0
  %438 = vmatprep.mubr.bf16.mxu0 0
  %439 = vmatmul.mubr.bf16.gmra.mxu0 %v231
  %v440 = vpop.f32.mrf.mxu0
  %v441 = vadd.f32 0.0, %v440
  %v442 = vpop.f32.mrf.mxu0
  %v443 = vpop.f32.mrf.mxu0
  %v444 = vadd.f32 0.0, %v443
  %v445 = vpop.f32.mrf.mxu0
  %446 = vmatprep.mubr.bf16.mxu0 0
  %447 = vmatmul.mubr.bf16.gmra.mxu0 %v232
  %v448 = vpop.f32.mrf.mxu0
  %v449 = vadd.f32 0.0, %v448
  %v450 = vpop.f32.mrf.mxu0
  %v451 = vpop.f32.mrf.mxu0
  %v452 = vadd.f32 0.0, %v451
  %v453 = vpop.f32.mrf.mxu0
  %454 = vmatprep.mubr.bf16.mxu0 0
  %455 = vmatmul.mubr.bf16.gmra.mxu0 %v233
  %v456 = vpop.f32.mrf.mxu0
  %v457 = vadd.f32 0.0, %v456
  %v458 = vpop.f32.mrf.mxu0
  %v459 = vpop.f32.mrf.mxu0
  %v460 = vadd.f32 0.0, %v459
  %v461 = vpop.f32.mrf.mxu0
  %462 = vmatprep.mubr.bf16.mxu0 0
  %463 = vmatmul.mubr.bf16.gmra.mxu0 %v234
  %v464 = vpop.f32.mrf.mxu0
  %v465 = vadd.f32 0.0, %v464
  %v466 = vpop.f32.mrf.mxu0
  %v467 = vpop.f32.mrf.mxu0
  %v468 = vadd.f32 0.0, %v467
  %v469 = vpop.f32.mrf.mxu0
  %470 = vmatprep.mubr.bf16.mxu0 0
  %471 = vmatmul.mubr.bf16.gmra.mxu0 %v235
  %v472 = vpop.f32.mrf.mxu0
  %v473 = vadd.f32 0.0, %v472
  %v474 = vpop.f32.mrf.mxu0
  %v475 = vpop.f32.mrf.mxu0
  %v476 = vadd.f32 0.0, %v475
  %v477 = vpop.f32.mrf.mxu0
  %478 = vmatprep.mubr.bf16.mxu0 0
  %479 = vmatmul.mubr.bf16.gmra.mxu0 %v236
  %v480 = vpop.f32.mrf.mxu0
  %v481 = vadd.f32 0.0, %v480
  %v482 = vpop.f32.mrf.mxu0
  %v483 = vpop.f32.mrf.mxu0
  %v484 = vadd.f32 0.0, %v483
  %v485 = vpop.f32.mrf.mxu0
  %486 = vmatprep.mubr.bf16.mxu0 0
  %487 = vmatmul.mubr.bf16.gmra.mxu0 %v237
  %v488 = vpop.f32.mrf.mxu0
  %v489 = vadd.f32 0.0, %v488
  %v490 = vpop.f32.mrf.mxu0
  %v491 = vpop.f32.mrf.mxu0
  %v492 = vadd.f32 0.0, %v491
  %v493 = vpop.f32.mrf.mxu0
  %494 = vmatprep.mubr.bf16.mxu0 0
  %495 = vmatmul.mubr.bf16.gmra.mxu0 %v238
  %v496 = vpop.f32.mrf.mxu0
  %v497 = vadd.f32 0.0, %v496
  %v498 = vpop.f32.mrf.mxu0
  %v499 = vpop.f32.mrf.mxu0
  %v500 = vadd.f32 0.0, %v499
  %v501 = vpop.f32.mrf.mxu0
  %502 = vmatprep.mubr.bf16.mxu0 0
  %503 = vmatmul.mubr.bf16.gmra.mxu0 %v239
  %v504 = vpop.f32.mrf.mxu0
  %v505 = vadd.f32 0.0, %v504
  %v506 = vpop.f32.mrf.mxu0
  %v507 = vpop.f32.mrf.mxu0
  %v508 = vadd.f32 0.0, %v507
  %v509 = vpop.f32.mrf.mxu0
  %510 = vmatprep.mubr.bf16.mxu0 0
  %511 = vmatmul.mubr.bf16.gmra.mxu0 %v240
  %v512 = vpop.f32.mrf.mxu0
  %v513 = vadd.f32 0.0, %v512
  %v514 = vpop.f32.mrf.mxu0
  %v515 = vpop.f32.mrf.mxu0
  %v516 = vadd.f32 0.0, %v515
  %v517 = vpop.f32.mrf.mxu0
  %518 = vmatprep.mubr.bf16.mxu0 0
  %519 = vmatmul.mubr.bf16.gmra.mxu0 %v241
  %v520 = vpop.f32.mrf.mxu0
  %v521 = vadd.f32 0.0, %v520
  %v522 = vpop.f32.mrf.mxu0
  %v523 = vpop.f32.mrf.mxu0
  %v524 = vadd.f32 0.0, %v523
  %v525 = vpop.f32.mrf.mxu0
  %526 = vmatprep.mubr.bf16.mxu0 0
  %527 = vmatmul.mubr.bf16.gmra.mxu0 %v242
  %v528 = vpop.f32.mrf.mxu0
  %v529 = vadd.f32 0.0, %v528
  %v530 = vpop.f32.mrf.mxu0
  %v531 = vpop.f32.mrf.mxu0
  %v532 = vadd.f32 0.0, %v531
  %v533 = vpop.f32.mrf.mxu0
  %534 = vmatprep.mubr.bf16.mxu0 0
  %535 = vmatmul.mubr.bf16.gmra.mxu0 %v243
  %v536 = vpop.f32.mrf.mxu0
  %v537 = vadd.f32 0.0, %v536
  %v538 = vpop.f32.mrf.mxu0
  %v539 = vpop.f32.mrf.mxu0
  %v540 = vadd.f32 0.0, %v539
  %v541 = vpop.f32.mrf.mxu0
  %542 = vmatprep.mubr.bf16.mxu0 0
  %543 = vmatmul.mubr.bf16.gmra.mxu0 %v244
  %v544 = vpop.f32.mrf.mxu0
  %v545 = vadd.f32 0.0, %v544
  %v546 = vpop.f32.mrf.mxu0
  %v547 = vpop.f32.mrf.mxu0
  %v548 = vadd.f32 0.0, %v547
  %v549 = vpop.f32.mrf.mxu0
  %550 = vmatprep.mubr.bf16.mxu0 0
  %551 = vmatmul.mubr.bf16.gmra.mxu0 %v245
  %v552 = vpop.f32.mrf.mxu0
  %v553 = vadd.f32 0.0, %v552
  %v554 = vpop.f32.mrf.mxu0
  %v555 = vpop.f32.mrf.mxu0
  %v556 = vadd.f32 0.0, %v555
  %v557 = vpop.f32.mrf.mxu0
  %558 = vmatprep.mubr.bf16.mxu0 0
  %559 = vmatmul.mubr.bf16.gmra.mxu0 %v246
  %v560 = vpop.f32.mrf.mxu0
  %v561 = vadd.f32 0.0, %v560
  %v562 = vpop.f32.mrf.mxu0
  %v563 = vpop.f32.mrf.mxu0
  %v564 = vadd.f32 0.0, %v563
  %v565 = vpop.f32.mrf.mxu0
  %566 = vmatprep.mubr.bf16.mxu0 0
  %567 = vmatmul.mubr.bf16.gmra.mxu0 %v247
  %v568 = vpop.f32.mrf.mxu0
  %v569 = vadd.f32 0.0, %v568
  %v570 = vpop.f32.mrf.mxu0
  %v571 = vpop.f32.mrf.mxu0
  %v572 = vadd.f32 0.0, %v571
  %v573 = vpop.f32.mrf.mxu0
  %574 = vmatprep.mubr.bf16.mxu0 0
  %575 = vmatmul.mubr.bf16.gmra.mxu0 %v248
  %v576 = vpop.f32.mrf.mxu0
  %v577 = vadd.f32 0.0, %v576
  %v578 = vpop.f32.mrf.mxu0
  %v579 = vpop.f32.mrf.mxu0
  %v580 = vadd.f32 0.0, %v579
  %v581 = vpop.f32.mrf.mxu0
  %582 = vmatprep.mubr.bf16.mxu0 0
  %583 = vmatmul.mubr.bf16.gmra.mxu0 %v249
  %v584 = vpop.f32.mrf.mxu0
  %v585 = vadd.f32 0.0, %v584
  %v586 = vpop.f32.mrf.mxu0
  %v587 = vpop.f32.mrf.mxu0
  %v588 = vadd.f32 0.0, %v587
  %v589 = vpop.f32.mrf.mxu0
  %590 = vmatprep.mubr.bf16.mxu0 0
  %591 = vmatmul.mubr.bf16.gmra.mxu0 %v250
  %v592 = vpop.f32.mrf.mxu0
  %v593 = vadd.f32 0.0, %v592
  %v594 = vpop.f32.mrf.mxu0
  %v595 = vpop.f32.mrf.mxu0
  %v596 = vadd.f32 0.0, %v595
  %v597 = vpop.f32.mrf.mxu0
  %598 = vmatprep.mubr.bf16.mxu0 0
  %599 = vmatmul.mubr.bf16.gmra.mxu0 %v251
  %v600 = vpop.f32.mrf.mxu0
  %v601 = vadd.f32 0.0, %v600
  %v602 = vpop.f32.mrf.mxu0
  %v603 = vpop.f32.mrf.mxu0
  %v604 = vadd.f32 0.0, %v603
  %v605 = vpop.f32.mrf.mxu0
  %606 = vmatprep.mubr.bf16.mxu0 0
  %607 = vmatmul.mubr.bf16.gmra.mxu0 %v252
  %v608 = vpop.f32.mrf.mxu0
  %v609 = vadd.f32 0.0, %v608
  %v610 = vpop.f32.mrf.mxu0
  %v611 = vpop.f32.mrf.mxu0
  %v612 = vadd.f32 0.0, %v611
  %v613 = vpop.f32.mrf.mxu0
  %614 = vmatprep.mubr.bf16.mxu0 0
  %615 = vmatmul.mubr.bf16.gmra.mxu0 %v253
  %v616 = vpop.f32.mrf.mxu0
  %v617 = vadd.f32 0.0, %v616
  %v618 = vpop.f32.mrf.mxu0
  %v619 = vpop.f32.mrf.mxu0
  %v620 = vadd.f32 0.0, %v619
  %v621 = vpop.f32.mrf.mxu0
  %622 = vdwg.mxu0
  %623 = vst [vmem:[%s2] sm:$0xff] %v369
  %624 = vst [vmem:[%s2 + $0x8] sm:$0xff] %v372
  %625 = vst [vmem:[%s2 + $0x10] sm:$0xff] %v377
  %626 = vst [vmem:[%s2 + $0x18] sm:$0xff] %v380
  %627 = vst [vmem:[%s2 + $0x20] sm:$0xff] %v385
  %628 = vst [vmem:[%s2 + $0x28] sm:$0xff] %v388
  %629 = vst [vmem:[%s2 + $0x30] sm:$0xff] %v393
  %630 = vst [vmem:[%s2 + $0x38] sm:$0xff] %v396
  %631 = vst [vmem:[%s2 + $0x40] sm:$0xff] %v401
  %632 = vst [vmem:[%s2 + $0x48] sm:$0xff] %v404
  %633 = vst [vmem:[%s2 + $0x50] sm:$0xff] %v409
  %634 = vst [vmem:[%s2 + $0x58] sm:$0xff] %v412
  %635 = vst [vmem:[%s2 + $0x60] sm:$0xff] %v417
  %636 = vst [vmem:[%s2 + $0x68] sm:$0xff] %v420
  %637 = vst [vmem:[%s2 + $0x70] sm:$0xff] %v425
  %638 = vst [vmem:[%s2 + $0x78] sm:$0xff] %v428
  %639 = vst [vmem:[%s2 + $0x80] sm:$0xff] %v433
  %640 = vst [vmem:[%s2 + $0x88] sm:$0xff] %v436
  %641 = vst [vmem:[%s2 + $0x90] sm:$0xff] %v441
  %642 = vst [vmem:[%s2 + $0x98] sm:$0xff] %v444
  %643 = vst [vmem:[%s2 + $0xa0] sm:$0xff] %v449
  %644 = vst [vmem:[%s2 + $0xa8] sm:$0xff] %v452
  %645 = vst [vmem:[%s2 + $0xb0] sm:$0xff] %v457
  %646 = vst [vmem:[%s2 + $0xb8] sm:$0xff] %v460
  %647 = vst [vmem:[%s2 + $0xc0] sm:$0xff] %v465
  %648 = vst [vmem:[%s2 + $0xc8] sm:$0xff] %v468
  %649 = vst [vmem:[%s2 + $0xd0] sm:$0xff] %v473
  %650 = vst [vmem:[%s2 + $0xd8] sm:$0xff] %v476
  %651 = vst [vmem:[%s2 + $0xe0] sm:$0xff] %v481
  %652 = vst [vmem:[%s2 + $0xe8] sm:$0xff] %v484
  %653 = vst [vmem:[%s2 + $0xf0] sm:$0xff] %v489
  %654 = vst [vmem:[%s2 + $0xf8] sm:$0xff] %v492
  %655 = vst [vmem:[%s2 + $0x100] sm:$0xff] %v497
  %656 = vst [vmem:[%s2 + $0x108] sm:$0xff] %v500
  %657 = vst [vmem:[%s2 + $0x110] sm:$0xff] %v505
  %658 = vst [vmem:[%s2 + $0x118] sm:$0xff] %v508
  %659 = vst [vmem:[%s2 + $0x120] sm:$0xff] %v513
  %660 = vst [vmem:[%s2 + $0x128] sm:$0xff] %v516
  %661 = vst [vmem:[%s2 + $0x130] sm:$0xff] %v521
  %662 = vst [vmem:[%s2 + $0x138] sm:$0xff] %v524
  %663 = vst [vmem:[%s2 + $0x140] sm:$0xff] %v529
  %664 = vst [vmem:[%s2 + $0x148] sm:$0xff] %v532
  %665 = vst [vmem:[%s2 + $0x150] sm:$0xff] %v537
  %666 = vst [vmem:[%s2 + $0x158] sm:$0xff] %v540
  %667 = vst [vmem:[%s2 + $0x160] sm:$0xff] %v545
  %668 = vst [vmem:[%s2 + $0x168] sm:$0xff] %v548
  %669 = vst [vmem:[%s2 + $0x170] sm:$0xff] %v553
  %670 = vst [vmem:[%s2 + $0x178] sm:$0xff] %v556
  %671 = vst [vmem:[%s2 + $0x180] sm:$0xff] %v561
  %672 = vst [vmem:[%s2 + $0x188] sm:$0xff] %v564
  %673 = vst [vmem:[%s2 + $0x190] sm:$0xff] %v569
  %674 = vst [vmem:[%s2 + $0x198] sm:$0xff] %v572
  %675 = vst [vmem:[%s2 + $0x1a0] sm:$0xff] %v577
  %676 = vst [vmem:[%s2 + $0x1a8] sm:$0xff] %v580
  %677 = vst [vmem:[%s2 + $0x1b0] sm:$0xff] %v585
  %678 = vst [vmem:[%s2 + $0x1b8] sm:$0xff] %v588
  %679 = vst [vmem:[%s2 + $0x1c0] sm:$0xff] %v593
  %680 = vst [vmem:[%s2 + $0x1c8] sm:$0xff] %v596
  %681 = vst [vmem:[%s2 + $0x1d0] sm:$0xff] %v601
  %682 = vst [vmem:[%s2 + $0x1d8] sm:$0xff] %v604
  %683 = vst [vmem:[%s2 + $0x1e0] sm:$0xff] %v609
  %684 = vst [vmem:[%s2 + $0x1e8] sm:$0xff] %v612
  %685 = vst [vmem:[%s2 + $0x1f0] sm:$0xff] %v617
  %686 = vst [vmem:[%s2 + $0x1f8] sm:$0xff] %v620
  %v687 = vadd.f32 %v369, %v372
  %v688 = vadd.f32 %v687, %v377
  %v689 = vadd.f32 %v688, %v380
  %v690 = vadd.f32 %v689, %v385
  %v691 = vadd.f32 %v690, %v388
  %v692 = vadd.f32 %v691, %v393
  %v693 = vadd.f32 %v692, %v396
  %v694 = vadd.f32 %v693, %v401
  %v695 = vadd.f32 %v694, %v404
  %v696 = vadd.f32 %v695, %v409
  %v697 = vadd.f32 %v696, %v412
  %v698 = vadd.f32 %v697, %v417
  %v699 = vadd.f32 %v698, %v420
  %v700 = vadd.f32 %v699, %v425
  %v701 = vadd.f32 %v700, %v428
  %v702 = vadd.f32 %v701, %v433
  %v703 = vadd.f32 %v702, %v436
  %v704 = vadd.f32 %v703, %v441
  %v705 = vadd.f32 %v704, %v444
  %v706 = vadd.f32 %v705, %v449
  %v707 = vadd.f32 %v706, %v452
  %v708 = vadd.f32 %v707, %v457
  %v709 = vadd.f32 %v708, %v460
  %v710 = vadd.f32 %v709, %v465
  %v711 = vadd.f32 %v710, %v468
  %v712 = vadd.f32 %v711, %v473
  %v713 = vadd.f32 %v712, %v476
  %v714 = vadd.f32 %v713, %v481
  %v715 = vadd.f32 %v714, %v484
  %v716 = vadd.f32 %v715, %v489
  %v717 = vadd.f32 %v716, %v492
  %v718 = vadd.f32 %v717, %v497
  %v719 = vadd.f32 %v718, %v500
  %v720 = vadd.f32 %v719, %v505
  %v721 = vadd.f32 %v720, %v508
  %v722 = vadd.f32 %v721, %v513
  %v723 = vadd.f32 %v722, %v516
  %v724 = vadd.f32 %v723, %v521
  %v725 = vadd.f32 %v724, %v524
  %v726 = vadd.f32 %v725, %v529
  %v727 = vadd.f32 %v726, %v532
  %v728 = vadd.f32 %v727, %v537
  %v729 = vadd.f32 %v728, %v540
  %v730 = vadd.f32 %v729, %v545
  %v731 = vadd.f32 %v730, %v548
  %v732 = vadd.f32 %v731, %v553
  %v733 = vadd.f32 %v732, %v556
  %v734 = vadd.f32 %v733, %v561
  %v735 = vadd.f32 %v734, %v564
  %v736 = vadd.f32 %v735, %v569
  %v737 = vadd.f32 %v736, %v572
  %v738 = vadd.f32 %v737, %v577
  %v739 = vadd.f32 %v738, %v580
  %v740 = vadd.f32 %v739, %v585
  %v741 = vadd.f32 %v740, %v588
  %v742 = vadd.f32 %v741, %v593
  %v743 = vadd.f32 %v742, %v596
  %v744 = vadd.f32 %v743, %v601
  %v745 = vadd.f32 %v744, %v604
  %v746 = vadd.f32 %v745, %v609
  %v747 = vadd.f32 %v746, %v612
  %v748 = vadd.f32 %v747, %v617
  %v749 = vadd.f32 %v748, %v620
  %v750 = vrot.slane %v749, 4
  %v751 = vadd.f32 %v749, %v750
  %v752 = vrot.slane %v751, 2
  %v753 = vadd.f32 %v751, %v752
  %v754 = vrot.slane %v753, 1
  %v755 = vadd.f32 %v753, %v754
  %v756 = vmul.f32 %v369, %v369
  %v757 = vmul.f32 %v372, %v372
  %v758 = vmul.f32 %v377, %v377
  %v759 = vmul.f32 %v380, %v380
  %v760 = vmul.f32 %v385, %v385
  %v761 = vmul.f32 %v388, %v388
  %v762 = vmul.f32 %v393, %v393
  %v763 = vmul.f32 %v396, %v396
  %v764 = vmul.f32 %v401, %v401
  %v765 = vmul.f32 %v404, %v404
  %v766 = vmul.f32 %v409, %v409
  %v767 = vmul.f32 %v412, %v412
  %v768 = vmul.f32 %v417, %v417
  %v769 = vmul.f32 %v420, %v420
  %v770 = vmul.f32 %v425, %v425
  %v771 = vmul.f32 %v428, %v428
  %v772 = vmul.f32 %v433, %v433
  %v773 = vmul.f32 %v436, %v436
  %v774 = vmul.f32 %v441, %v441
  %v775 = vmul.f32 %v444, %v444
  %v776 = vmul.f32 %v449, %v449
  %v777 = vmul.f32 %v452, %v452
  %v778 = vmul.f32 %v457, %v457
  %v779 = vmul.f32 %v460, %v460
  %v780 = vmul.f32 %v465, %v465
  %v781 = vmul.f32 %v468, %v468
  %v782 = vmul.f32 %v473, %v473
  %v783 = vmul.f32 %v476, %v476
  %v784 = vmul.f32 %v481, %v481
  %v785 = vmul.f32 %v484, %v484
  %v786 = vmul.f32 %v489, %v489
  %v787 = vmul.f32 %v492, %v492
  %v788 = vmul.f32 %v497, %v497
  %v789 = vmul.f32 %v500, %v500
  %v790 = vmul.f32 %v505, %v505
  %v791 = vmul.f32 %v508, %v508
  %v792 = vmul.f32 %v513, %v513
  %v793 = vmul.f32 %v516, %v516
  %v794 = vmul.f32 %v521, %v521
  %v795 = vmul.f32 %v524, %v524
  %v796 = vmul.f32 %v529, %v529
  %v797 = vmul.f32 %v532, %v532
  %v798 = vmul.f32 %v537, %v537
  %v799 = vmul.f32 %v540, %v540
  %v800 = vmul.f32 %v545, %v545
  %v801 = vmul.f32 %v548, %v548
  %v802 = vmul.f32 %v553, %v553
  %v803 = vmul.f32 %v556, %v556
  %v804 = vmul.f32 %v561, %v561
  %v805 = vmul.f32 %v564, %v564
  %v806 = vmul.f32 %v569, %v569
  %v807 = vmul.f32 %v572, %v572
  %v808 = vmul.f32 %v577, %v577
  %v809 = vmul.f32 %v580, %v580
  %v810 = vmul.f32 %v585, %v585
  %v811 = vmul.f32 %v588, %v588
  %v812 = vmul.f32 %v593, %v593
  %v813 = vmul.f32 %v596, %v596
  %v814 = vmul.f32 %v601, %v601
  %v815 = vmul.f32 %v604, %v604
  %v816 = vmul.f32 %v609, %v609
  %v817 = vmul.f32 %v612, %v612
  %v818 = vmul.f32 %v617, %v617
  %v819 = vmul.f32 %v620, %v620
  %v820 = vadd.f32 %v756, %v757
  %v821 = vadd.f32 %v820, %v758
  %v822 = vadd.f32 %v821, %v759
  %v823 = vadd.f32 %v822, %v760
  %v824 = vadd.f32 %v823, %v761
  %v825 = vadd.f32 %v824, %v762
  %v826 = vadd.f32 %v825, %v763
  %v827 = vadd.f32 %v826, %v764
  %v828 = vadd.f32 %v827, %v765
  %v829 = vadd.f32 %v828, %v766
  %v830 = vadd.f32 %v829, %v767
  %v831 = vadd.f32 %v830, %v768
  %v832 = vadd.f32 %v831, %v769
  %v833 = vadd.f32 %v832, %v770
  %v834 = vadd.f32 %v833, %v771
  %v835 = vadd.f32 %v834, %v772
  %v836 = vadd.f32 %v835, %v773
  %v837 = vadd.f32 %v836, %v774
  %v838 = vadd.f32 %v837, %v775
  %v839 = vadd.f32 %v838, %v776
  %v840 = vadd.f32 %v839, %v777
  %v841 = vadd.f32 %v840, %v778
  %v842 = vadd.f32 %v841, %v779
  %v843 = vadd.f32 %v842, %v780
  %v844 = vadd.f32 %v843, %v781
  %v845 = vadd.f32 %v844, %v782
  %v846 = vadd.f32 %v845, %v783
  %v847 = vadd.f32 %v846, %v784
  %v848 = vadd.f32 %v847, %v785
  %v849 = vadd.f32 %v848, %v786
  %v850 = vadd.f32 %v849, %v787
  %v851 = vadd.f32 %v850, %v788
  %v852 = vadd.f32 %v851, %v789
  %v853 = vadd.f32 %v852, %v790
  %v854 = vadd.f32 %v853, %v791
  %v855 = vadd.f32 %v854, %v792
  %v856 = vadd.f32 %v855, %v793
  %v857 = vadd.f32 %v856, %v794
  %v858 = vadd.f32 %v857, %v795
  %v859 = vadd.f32 %v858, %v796
  %v860 = vadd.f32 %v859, %v797
  %v861 = vadd.f32 %v860, %v798
  %v862 = vadd.f32 %v861, %v799
  %v863 = vadd.f32 %v862, %v800
  %v864 = vadd.f32 %v863, %v801
  %v865 = vadd.f32 %v864, %v802
  %v866 = vadd.f32 %v865, %v803
  %v867 = vadd.f32 %v866, %v804
  %v868 = vadd.f32 %v867, %v805
  %v869 = vadd.f32 %v868, %v806
  %v870 = vadd.f32 %v869, %v807
  %v871 = vadd.f32 %v870, %v808
  %v872 = vadd.f32 %v871, %v809
  %v873 = vadd.f32 %v872, %v810
  %v874 = vadd.f32 %v873, %v811
  %v875 = vadd.f32 %v874, %v812
  %v876 = vadd.f32 %v875, %v813
  %v877 = vadd.f32 %v876, %v814
  %v878 = vadd.f32 %v877, %v815
  %v879 = vadd.f32 %v878, %v816
  %v880 = vadd.f32 %v879, %v817
  %v881 = vadd.f32 %v880, %v818
  %v882 = vadd.f32 %v881, %v819
  %v883 = vrot.slane %v882, 4
  %v884 = vadd.f32 %v882, %v883
  %v885 = vrot.slane %v884, 2
  %v886 = vadd.f32 %v884, %v885
  %v887 = vrot.slane %v886, 1
  %v888 = vadd.f32 %v886, %v887
  %vm889 = vcmask 1040384
  %v890 = vsel %vm889, %v755, %v888
  %891 = vst [vmem:[%s3] sm:$0x3] %v890
  // Predicated region
  $region10: #{conv_bn_relu.2} parent=0 // pred_check
    _
  $region11: #{conv_bn_relu.2} parent=0 // pred_check_branch
    %893 = sbr.rel (0) target = $region13
  $region12: #{conv_bn_relu.2} parent=0 // pred_region
    _
  $region13: #{conv_bn_relu.2} parent=0 // pred_fallthru
    _
  // Predicated region
  $region14: #{conv_bn_relu.2} parent=0 // pred_check
    _
  $region15: #{conv_bn_relu.2} parent=0 // pred_check_branch
    %895 = sbr.rel (0) target = $region17
  $region16: #{conv_bn_relu.2} parent=0 // pred_region
    _
  $region17: #{conv_bn_relu.2} parent=0 // pred_fallthru
    _
  // Predicated region
  $region18: #{conv_bn_relu.2} parent=0 // pred_check
    _
  $region19: #{conv_bn_relu.2} parent=0 // pred_check_branch
    %897 = sbr.rel (0) target = $region21
  $region20: #{conv_bn_relu.2} parent=0 // pred_region
    _
  $region21: #{conv_bn_relu.2} parent=0 // pred_fallthru
    _
  // Predicated region
  $region22: #{conv_bn_relu.2} parent=0 // pred_check
    _
  $region23: #{conv_bn_relu.2} parent=0 // pred_check_branch
    %899 = sbr.rel (0) target = $region25
  $region24: #{conv_bn_relu.2} parent=0 // pred_region
    _
  $region25: #{conv_bn_relu.2} parent=0 // pred_fallthru
    _

</llo_original>
